<compile_context>
chip_gen: v5e
topology: v5e:2x2
jax: 0.10.0
libtpu: 0.0.40
codegen_flags: <defaults>
</compile_context>

<pallas_src>
import functools

import jax
import jax.numpy as jnp
from jax.experimental import pallas as pl
from jax.experimental.pallas import tpu as pltpu


def _round_up(n: int, m: int) -> int:
    return ((n + m - 1) // m) * m


def critic_kernel(x_ref, w1_ref, b1_ref, w2_ref, b2_ref, w3_ref, b3_ref, o_ref):
    # Layer 1: bf16 x @ bf16 W1 -> f32 accum, bias add, ReLU.
    h1 = jnp.dot(x_ref[...], w1_ref[...], preferred_element_type=jnp.float32)
    h1 = jnp.maximum(h1 + b1_ref[...], 0.0)
    # Layer 2: cast activations to bf16 for the MXU, accumulate in f32.
    h2 = jnp.dot(h1.astype(w2_ref.dtype), w2_ref[...],
                 preferred_element_type=jnp.float32)
    h2 = jnp.maximum(h2 + b2_ref[...], 0.0)
    # Layer 3 (no activation); output block is lane-dense (padded to 128 lanes).
    out = jnp.dot(h2.astype(w3_ref.dtype), w3_ref[...],
                  preferred_element_type=jnp.float32)
    o_ref[...] = (out + b3_ref[...]).astype(o_ref.dtype)


@functools.partial(jax.jit, static_argnames=("block_b",))
def critic_forward(x, params, *, block_b=256):
    """x: (B, n_states). params: w1,b1,w2,b2,w3,b3 with weights as (in, out)."""
    w1, b1 = params["w1"], params["b1"]
    w2, b2 = params["w2"], params["b2"]
    w3, b3 = params["w3"], params["b3"]

    B, n_states = x.shape
    n_hidden = w1.shape[1]
    n_actions = w3.shape[1]

    # Lane-friendly padded widths (multiples of 128) for input features / output.
    k_pad = _round_up(max(n_states, 128), 128)
    n_pad = _round_up(max(n_actions, 128), 128)

    # Batch tile: second-to-last block dim must be a multiple of 8.
    tb = min(block_b, _round_up(B, 8))
    b_pad = _round_up(B, tb)

    cdt = jnp.bfloat16  # MXU input dtype; accumulation stays f32.
    x_p = jnp.pad(x, ((0, b_pad - B), (0, k_pad - n_states))).astype(cdt)
    w1_p = jnp.pad(w1.astype(cdt), ((0, k_pad - n_states), (0, 0)))
    w2_p = w2.astype(cdt)
    w3_p = jnp.pad(w3.astype(cdt), ((0, 0), (0, n_pad - n_actions)))
    b1_p = b1.astype(jnp.float32).reshape(1, n_hidden)
    b2_p = b2.astype(jnp.float32).reshape(1, n_hidden)
    b3_p = jnp.pad(b3.astype(jnp.float32).reshape(1, n_actions),
                   ((0, 0), (0, n_pad - n_actions)))

    grid = (b_pad // tb,)

    # Weights/biases: full-array blocks with constant index maps -> DMA'd once,
    # VMEM-resident across all batch tiles.
    const = lambda a: pl.BlockSpec(a.shape, lambda i, nd=a.ndim: (0,) * nd)

    out_padded = pl.pallas_call(
        critic_kernel,
        out_shape=jax.ShapeDtypeStruct((b_pad, n_pad), jnp.float32),
        grid=grid,
        in_specs=[
            pl.BlockSpec((tb, k_pad), lambda i: (i, 0)),  # x: tiled over batch
            const(w1_p), const(b1_p),
            const(w2_p), const(b2_p),
            const(w3_p), const(b3_p),
        ],
        out_specs=pl.BlockSpec((tb, n_pad), lambda i: (i, 0)),
        compiler_params=pltpu.CompilerParams(
            dimension_semantics=("parallel",),
        ),
    )(x_p, w1_p, b1_p, w2_p, b2_p, w3_p, b3_p)

    return out_padded[:B, :n_actions]


def init_critic_params(key, n_states, n_actions, n_hidden=128):
    """PyTorch Linear-style init U(-1/sqrt(fan_in), 1/sqrt(fan_in)).
    Weights stored (in, out) in bf16; biases in f32."""
    keys = jax.random.split(key, 6)

    def linear(kw, kb, fan_in, fan_out):
        bound = 1.0 / jnp.sqrt(jnp.float32(fan_in))
        w = jax.random.uniform(kw, (fan_in, fan_out), jnp.float32, -bound, bound)
        b = jax.random.uniform(kb, (1, fan_out), jnp.float32, -bound, bound)
        return w.astype(jnp.bfloat16), b

    w1, b1 = linear(keys[0], keys[1], n_states, n_hidden)
    w2, b2 = linear(keys[2], keys[3], n_hidden, n_hidden)
    w3, b3 = linear(keys[4], keys[5], n_hidden, n_actions)
    return {"w1": w1, "b1": b1, "w2": w2, "b2": b2, "w3": w3, "b3": b3}


def critic_reference(x, p):
    """Pure-JAX reference of the same math (bf16 MXU inputs, f32 accumulation)."""
    f32 = jnp.float32
    hp = jax.lax.Precision.HIGHEST
    w1, w2, w3 = p["w1"].astype(f32), p["w2"].astype(f32), p["w3"].astype(f32)
    xb = x.astype(jnp.bfloat16).astype(f32)
    h1 = jnp.maximum(jnp.dot(xb, w1, precision=hp) + p["b1"], 0.0)
    h1 = h1.astype(jnp.bfloat16).astype(f32)
    h2 = jnp.maximum(jnp.dot(h1, w2, precision=hp) + p["b2"], 0.0)
    h2 = h2.astype(jnp.bfloat16).astype(f32)
    return jnp.dot(h2, w3, precision=hp) + p["b3"]


if __name__ == "__main__":
    # Small shapes consistent with the module (n_hidden default 128); batch not
    # a multiple of the tile to exercise the padding + multi-step grid path.
    batch, n_states, n_actions, n_hidden = 500, 16, 4, 128

    key = jax.random.PRNGKey(0)
    k_x, k_p = jax.random.split(key)
    x = jax.random.normal(k_x, (batch, n_states), jnp.float32)
    params = init_critic_params(k_p, n_states, n_actions, n_hidden)

    out = critic_forward(x, params, block_b=256)
    out = jax.block_until_ready(out)

    ref = critic_reference(x, params)
    assert out.shape == (batch, n_actions), out.shape
    assert jnp.allclose(out, ref, atol=1e-3, rtol=1e-3), (
        f"mismatch vs reference: max abs err {jnp.max(jnp.abs(out - ref))}")

    print("KERNEL_OK")
</pallas_src>

<mosaic_0001>
module attributes {stable_mosaic.version = 11 : i64} {
  func.func @critic_kernel(%arg0: i32, %arg1: memref<256x128xbf16, #tpu.memory_space<vmem>>, %arg2: memref<128x128xbf16, #tpu.memory_space<vmem>>, %arg3: memref<1x128xf32, #tpu.memory_space<vmem>>, %arg4: memref<128x128xbf16, #tpu.memory_space<vmem>>, %arg5: memref<1x128xf32, #tpu.memory_space<vmem>>, %arg6: memref<128x128xbf16, #tpu.memory_space<vmem>>, %arg7: memref<1x128xf32, #tpu.memory_space<vmem>>, %arg8: memref<256x128xf32, #tpu.memory_space<vmem>>) attributes {dimension_semantics = [#tpu.dimension_semantics<parallel>], iteration_bounds = array<i64: 2>, scalar_prefetch = 0 : i64, scratch_operands = 0 : i64, tpu.core_type = #tpu.core_type<tc>, window_params = [{transform_indices = @transform_0, window_bounds = array<i64: 256, 128>}, {pipeline_mode = #tpu.pipeline_mode<synchronous>, transform_indices = @transform_1, window_bounds = array<i64: 128, 128>}, {pipeline_mode = #tpu.pipeline_mode<synchronous>, transform_indices = @transform_2, window_bounds = array<i64: 1, 128>}, {pipeline_mode = #tpu.pipeline_mode<synchronous>, transform_indices = @transform_3, window_bounds = array<i64: 128, 128>}, {pipeline_mode = #tpu.pipeline_mode<synchronous>, transform_indices = @transform_4, window_bounds = array<i64: 1, 128>}, {pipeline_mode = #tpu.pipeline_mode<synchronous>, transform_indices = @transform_5, window_bounds = array<i64: 128, 128>}, {pipeline_mode = #tpu.pipeline_mode<synchronous>, transform_indices = @transform_6, window_bounds = array<i64: 1, 128>}, {transform_indices = @transform_7, window_bounds = array<i64: 256, 128>}]} {
    %c0 = arith.constant 0 : index
    %c0_0 = arith.constant 0 : index
    %0 = vector.load %arg1[%c0, %c0_0] : memref<256x128xbf16, #tpu.memory_space<vmem>>, vector<256x128xbf16>
    %c0_1 = arith.constant 0 : index
    %c0_2 = arith.constant 0 : index
    %1 = vector.load %arg2[%c0_1, %c0_2] : memref<128x128xbf16, #tpu.memory_space<vmem>>, vector<128x128xbf16>
    %cst = arith.constant dense<0.000000e+00> : vector<256x128xf32>
    %2 = tpu.matmul %0, %1, %cst {dimension_numbers = #tpu.dot_dimension_numbers<[1], [0], [0], [1], [0, 0, 1, 1], [], []>} : vector<256x128xbf16>, vector<128x128xbf16>, vector<256x128xf32> -> vector<256x128xf32>
    %c0_3 = arith.constant 0 : index
    %c0_4 = arith.constant 0 : index
    %3 = vector.load %arg3[%c0_3, %c0_4] : memref<1x128xf32, #tpu.memory_space<vmem>>, vector<1x128xf32>
    %4 = vector.broadcast %3 : vector<1x128xf32> to vector<256x128xf32>
    %5 = arith.addf %2, %4 : vector<256x128xf32>
    %cst_5 = arith.constant 0.000000e+00 : f32
    %6 = vector.broadcast %cst_5 : f32 to vector<256x128xf32>
    %7 = arith.maximumf %5, %6 : vector<256x128xf32>
    %8 = arith.truncf %7 : vector<256x128xf32> to vector<256x128xbf16>
    %c0_6 = arith.constant 0 : index
    %c0_7 = arith.constant 0 : index
    %9 = vector.load %arg4[%c0_6, %c0_7] : memref<128x128xbf16, #tpu.memory_space<vmem>>, vector<128x128xbf16>
    %cst_8 = arith.constant dense<0.000000e+00> : vector<256x128xf32>
    %10 = tpu.matmul %8, %9, %cst_8 {dimension_numbers = #tpu.dot_dimension_numbers<[1], [0], [0], [1], [0, 0, 1, 1], [], []>} : vector<256x128xbf16>, vector<128x128xbf16>, vector<256x128xf32> -> vector<256x128xf32>
    %c0_9 = arith.constant 0 : index
    %c0_10 = arith.constant 0 : index
    %11 = vector.load %arg5[%c0_9, %c0_10] : memref<1x128xf32, #tpu.memory_space<vmem>>, vector<1x128xf32>
    %12 = vector.broadcast %11 : vector<1x128xf32> to vector<256x128xf32>
    %13 = arith.addf %10, %12 : vector<256x128xf32>
    %cst_11 = arith.constant 0.000000e+00 : f32
    %14 = vector.broadcast %cst_11 : f32 to vector<256x128xf32>
    %15 = arith.maximumf %13, %14 : vector<256x128xf32>
    %16 = arith.truncf %15 : vector<256x128xf32> to vector<256x128xbf16>
    %c0_12 = arith.constant 0 : index
    %c0_13 = arith.constant 0 : index
    %17 = vector.load %arg6[%c0_12, %c0_13] : memref<128x128xbf16, #tpu.memory_space<vmem>>, vector<128x128xbf16>
    %cst_14 = arith.constant dense<0.000000e+00> : vector<256x128xf32>
    %18 = tpu.matmul %16, %17, %cst_14 {dimension_numbers = #tpu.dot_dimension_numbers<[1], [0], [0], [1], [0, 0, 1, 1], [], []>} : vector<256x128xbf16>, vector<128x128xbf16>, vector<256x128xf32> -> vector<256x128xf32>
    %c0_15 = arith.constant 0 : index
    %c0_16 = arith.constant 0 : index
    %19 = vector.load %arg7[%c0_15, %c0_16] : memref<1x128xf32, #tpu.memory_space<vmem>>, vector<1x128xf32>
    %20 = vector.broadcast %19 : vector<1x128xf32> to vector<256x128xf32>
    %21 = arith.addf %18, %20 : vector<256x128xf32>
    %c0_17 = arith.constant 0 : index
    %c0_18 = arith.constant 0 : index
    %22 = vector.load %arg8[%c0_17, %c0_18] : memref<256x128xf32, #tpu.memory_space<vmem>>, vector<256x128xf32>
    tpu.vector_store %arg8[%c0_17, %c0_18], %21 {strides = array<i32>} : memref<256x128xf32, #tpu.memory_space<vmem>>, vector<256x128xf32>,
    return
  }
  func.func @transform_0(%arg0: i32) -> (i32, i32) {
    %c0_i32 = arith.constant 0 : i32
    %c0_i32_0 = arith.constant 0 : i32
    return %arg0, %c0_i32 : i32, i32
  }
  func.func @transform_1(%arg0: i32) -> (i32, i32) {
    %c0_i32 = arith.constant 0 : i32
    %c0_i32_0 = arith.constant 0 : i32
    %c0_i32_1 = arith.constant 0 : i32
    return %c0_i32, %c0_i32_0 : i32, i32
  }
  func.func @transform_2(%arg0: i32) -> (i32, i32) {
    %c0_i32 = arith.constant 0 : i32
    %c0_i32_0 = arith.constant 0 : i32
    %c0_i32_1 = arith.constant 0 : i32
    return %c0_i32, %c0_i32_0 : i32, i32
  }
  func.func @transform_3(%arg0: i32) -> (i32, i32) {
    %c0_i32 = arith.constant 0 : i32
    %c0_i32_0 = arith.constant 0 : i32
    %c0_i32_1 = arith.constant 0 : i32
    return %c0_i32, %c0_i32_0 : i32, i32
  }
  func.func @transform_4(%arg0: i32) -> (i32, i32) {
    %c0_i32 = arith.constant 0 : i32
    %c0_i32_0 = arith.constant 0 : i32
    %c0_i32_1 = arith.constant 0 : i32
    return %c0_i32, %c0_i32_0 : i32, i32
  }
  func.func @transform_5(%arg0: i32) -> (i32, i32) {
    %c0_i32 = arith.constant 0 : i32
    %c0_i32_0 = arith.constant 0 : i32
    %c0_i32_1 = arith.constant 0 : i32
    return %c0_i32, %c0_i32_0 : i32, i32
  }
  func.func @transform_6(%arg0: i32) -> (i32, i32) {
    %c0_i32 = arith.constant 0 : i32
    %c0_i32_0 = arith.constant 0 : i32
    %c0_i32_1 = arith.constant 0 : i32
    return %c0_i32, %c0_i32_0 : i32, i32
  }
  func.func @transform_7(%arg0: i32) -> (i32, i32) {
    %c0_i32 = arith.constant 0 : i32
    %c0_i32_0 = arith.constant 0 : i32
    return %arg0, %c0_i32 : i32, i32
  }
}

</mosaic_0001>

<llo_original>
// kernel: critic_forward.1
$region0: #{critic_forward.1}
  #allocation0 [shape = 'u32[]', space=smem, size = 0x4, offset = 0x4, fixed_abs, tag = 'smem constant byte address 0x4 - core index']
  #allocation1 [shape = 'u32[72,128]{1,0:T(1,128)}', space=vmem, size = 0x9000, scoped, tag = 'internal scratch']
  %s0 = inlined_call_operand.vmem [shape: bf16[512,128], index: 0, kind: input, shape index: {}]
  %s1 = inlined_call_operand.vmem [shape: bf16[128,128], index: 1, kind: input, shape index: {}]
  %s2 = inlined_call_operand.vmem [shape: f32[1,128], index: 2, kind: input, shape index: {}]
  %s3 = inlined_call_operand.vmem [shape: bf16[128,128], index: 3, kind: input, shape index: {}]
  %s4 = inlined_call_operand.vmem [shape: f32[1,128], index: 4, kind: input, shape index: {}]
  %s5 = inlined_call_operand.vmem [shape: bf16[128,128], index: 5, kind: input, shape index: {}]
  %s6 = inlined_call_operand.vmem [shape: f32[1,128], index: 6, kind: input, shape index: {}]
  %s7 = inlined_call_operand.vmem [shape: f32[512,128], index: 7, kind: output, shape index: {}]
  %s8 = sld [smem:[#allocation0]]
  $region61: #{critic_forward.1} parent=0
    _
  %s10 = ssub.s32 1, %s8
  %s11 = scalar_select 0, %s10, %s8
  loop: start=0, step=1, limit=4
  $region2: #{critic_forward.1} parent=0 // loop_pre_header
    _
  $region3: #{critic_forward.1} parent=0 // loop_header
    %s13 = sphi 0, %s17
    %p14 = scmp.ge.s32.totalorder %s13, 4
    %s23 = sphi 0, %s25
    %s26 = sphi 0, %s23
    %s27 = sphi 0, %s26
    %s43 = sphi 0, %s27
    %s47 = sphi 0, %s47
    %s49 = sphi 0, %s47
    %s50 = sphi 0, %s49
    %s64 = sphi 0, %s50
    %s68 = sphi 0, %s68
    %s70 = sphi 0, %s68
    %s71 = sphi 0, %s70
    %s85 = sphi 0, %s71
    %s89 = sphi 0, %s89
    %s91 = sphi 0, %s89
    %s92 = sphi 0, %s91
    %s106 = sphi 0, %s92
    %s110 = sphi 0, %s110
    %s112 = sphi 0, %s110
    %s113 = sphi 0, %s112
    %s127 = sphi 0, %s113
    %s131 = sphi 0, %s131
    %s133 = sphi 0, %s131
    %s134 = sphi 0, %s133
    %s148 = sphi 0, %s134
    %s152 = sphi 0, %s152
    %s154 = sphi 0, %s152
    %s155 = sphi 0, %s154
    %s169 = sphi 0, %s155
    %s175 = sphi 0, %s177
    %s178 = sphi 0, %s175
    %s179 = sphi 0, %s178
    %s195 = sphi 0, %s179
  $region4: #{critic_forward.1} parent=0 // loop_header_branch
    %16 = sbr.rel (%p14) target = $region8
  $region5: #{critic_forward.1} parent=0 // loop_body
    %s18 = ssub.s32 %s13, 1
    %s19 = ssub.s32 %s13, 2
    %s20 = sadd.s32 %s13, 1
    %s21 = ssub.s32 %s13, %s20
    %p22 = scmp.eq.s32.totalorder %s21, 0
    %s24 = sadd.s32 %s23, 1
    %s25 = scalar_select %p22, %s23, %s24
    %p28 = pneg %p22
    %p29 = scmp.eq.s32.totalorder %s13, 1
    %p30 = por %p28, %p29
    %p31 = scmp.ne.s32.totalorder %s23, %s26
    %p32 = scmp.eq.s32.totalorder %s13, 0
    %p33 = por %p31, %p32
    %p34 = scmp.ne.s32.totalorder %s23, %s26
    %p35 = scmp.eq.s32.totalorder %s18, 1
    %p36 = por %p34, %p35
    %p37 = scmp.ne.s32.totalorder %s26, %s27
    %p38 = scmp.eq.s32.totalorder %s18, 0
    %p39 = por %p37, %p38
    %p40 = scmp.ne.s32.totalorder %s26, %s27
    %p41 = scmp.eq.s32.totalorder %s19, 1
    %p42 = por %p40, %p41
    %p44 = scmp.ne.s32.totalorder %s27, %s43
    %p45 = scmp.eq.s32.totalorder %s19, 0
    %p46 = por %p44, %p45
    %s48 = sadd.s32 %s47, 1
    %p51 = scmp.eq.s32.totalorder %s13, 1
    %p52 = scmp.ne.s32.totalorder %s47, %s49
    %p53 = scmp.eq.s32.totalorder %s13, 0
    %p54 = por %p52, %p53
    %p55 = scmp.ne.s32.totalorder %s47, %s49
    %p56 = scmp.eq.s32.totalorder %s18, 1
    %p57 = por %p55, %p56
    %p58 = scmp.ne.s32.totalorder %s49, %s50
    %p59 = scmp.eq.s32.totalorder %s18, 0
    %p60 = por %p58, %p59
    %p61 = scmp.ne.s32.totalorder %s49, %s50
    %p62 = scmp.eq.s32.totalorder %s19, 1
    %p63 = por %p61, %p62
    %p65 = scmp.ne.s32.totalorder %s50, %s64
    %p66 = scmp.eq.s32.totalorder %s19, 0
    %p67 = por %p65, %p66
    %s69 = sadd.s32 %s68, 1
    %p72 = scmp.eq.s32.totalorder %s13, 1
    %p73 = scmp.ne.s32.totalorder %s68, %s70
    %p74 = scmp.eq.s32.totalorder %s13, 0
    %p75 = por %p73, %p74
    %p76 = scmp.ne.s32.totalorder %s68, %s70
    %p77 = scmp.eq.s32.totalorder %s18, 1
    %p78 = por %p76, %p77
    %p79 = scmp.ne.s32.totalorder %s70, %s71
    %p80 = scmp.eq.s32.totalorder %s18, 0
    %p81 = por %p79, %p80
    %p82 = scmp.ne.s32.totalorder %s70, %s71
    %p83 = scmp.eq.s32.totalorder %s19, 1
    %p84 = por %p82, %p83
    %p86 = scmp.ne.s32.totalorder %s71, %s85
    %p87 = scmp.eq.s32.totalorder %s19, 0
    %p88 = por %p86, %p87
    %s90 = sadd.s32 %s89, 1
    %p93 = scmp.eq.s32.totalorder %s13, 1
    %p94 = scmp.ne.s32.totalorder %s89, %s91
    %p95 = scmp.eq.s32.totalorder %s13, 0
    %p96 = por %p94, %p95
    %p97 = scmp.ne.s32.totalorder %s89, %s91
    %p98 = scmp.eq.s32.totalorder %s18, 1
    %p99 = por %p97, %p98
    %p100 = scmp.ne.s32.totalorder %s91, %s92
    %p101 = scmp.eq.s32.totalorder %s18, 0
    %p102 = por %p100, %p101
    %p103 = scmp.ne.s32.totalorder %s91, %s92
    %p104 = scmp.eq.s32.totalorder %s19, 1
    %p105 = por %p103, %p104
    %p107 = scmp.ne.s32.totalorder %s92, %s106
    %p108 = scmp.eq.s32.totalorder %s19, 0
    %p109 = por %p107, %p108
    %s111 = sadd.s32 %s110, 1
    %p114 = scmp.eq.s32.totalorder %s13, 1
    %p115 = scmp.ne.s32.totalorder %s110, %s112
    %p116 = scmp.eq.s32.totalorder %s13, 0
    %p117 = por %p115, %p116
    %p118 = scmp.ne.s32.totalorder %s110, %s112
    %p119 = scmp.eq.s32.totalorder %s18, 1
    %p120 = por %p118, %p119
    %p121 = scmp.ne.s32.totalorder %s112, %s113
    %p122 = scmp.eq.s32.totalorder %s18, 0
    %p123 = por %p121, %p122
    %p124 = scmp.ne.s32.totalorder %s112, %s113
    %p125 = scmp.eq.s32.totalorder %s19, 1
    %p126 = por %p124, %p125
    %p128 = scmp.ne.s32.totalorder %s113, %s127
    %p129 = scmp.eq.s32.totalorder %s19, 0
    %p130 = por %p128, %p129
    %s132 = sadd.s32 %s131, 1
    %p135 = scmp.eq.s32.totalorder %s13, 1
    %p136 = scmp.ne.s32.totalorder %s131, %s133
    %p137 = scmp.eq.s32.totalorder %s13, 0
    %p138 = por %p136, %p137
    %p139 = scmp.ne.s32.totalorder %s131, %s133
    %p140 = scmp.eq.s32.totalorder %s18, 1
    %p141 = por %p139, %p140
    %p142 = scmp.ne.s32.totalorder %s133, %s134
    %p143 = scmp.eq.s32.totalorder %s18, 0
    %p144 = por %p142, %p143
    %p145 = scmp.ne.s32.totalorder %s133, %s134
    %p146 = scmp.eq.s32.totalorder %s19, 1
    %p147 = por %p145, %p146
    %p149 = scmp.ne.s32.totalorder %s134, %s148
    %p150 = scmp.eq.s32.totalorder %s19, 0
    %p151 = por %p149, %p150
    %s153 = sadd.s32 %s152, 1
    %p156 = scmp.eq.s32.totalorder %s13, 1
    %p157 = scmp.ne.s32.totalorder %s152, %s154
    %p158 = scmp.eq.s32.totalorder %s13, 0
    %p159 = por %p157, %p158
    %p160 = scmp.ne.s32.totalorder %s152, %s154
    %p161 = scmp.eq.s32.totalorder %s18, 1
    %p162 = por %p160, %p161
    %p163 = scmp.ne.s32.totalorder %s154, %s155
    %p164 = scmp.eq.s32.totalorder %s18, 0
    %p165 = por %p163, %p164
    %p166 = scmp.ne.s32.totalorder %s154, %s155
    %p167 = scmp.eq.s32.totalorder %s19, 1
    %p168 = por %p166, %p167
    %p170 = scmp.ne.s32.totalorder %s155, %s169
    %p171 = scmp.eq.s32.totalorder %s19, 0
    %p172 = por %p170, %p171
    %s173 = ssub.s32 %s13, %s20
    %p174 = scmp.eq.s32.totalorder %s173, 0
    %s176 = sadd.s32 %s175, 1
    %s177 = scalar_select %p174, %s175, %s176
    %p180 = pneg %p174
    %p181 = scmp.eq.s32.totalorder %s13, 1
    %p182 = por %p180, %p181
    %p183 = scmp.ne.s32.totalorder %s175, %s178
    %p184 = scmp.eq.s32.totalorder %s13, 0
    %p185 = por %p183, %p184
    %p186 = scmp.ne.s32.totalorder %s175, %s178
    %p187 = scmp.eq.s32.totalorder %s18, 1
    %p188 = por %p186, %p187
    %p189 = scmp.ne.s32.totalorder %s178, %s179
    %p190 = scmp.eq.s32.totalorder %s18, 0
    %p191 = por %p189, %p190
    %p192 = scmp.ne.s32.totalorder %s178, %s179
    %p193 = scmp.eq.s32.totalorder %s19, 1
    %p194 = por %p192, %p193
    %p196 = scmp.ne.s32.totalorder %s179, %s195
    %p197 = scmp.eq.s32.totalorder %s19, 0
    %p198 = por %p196, %p197
    %p199 = scmp.le.s32.totalorder 1, %s13
    %p200 = scmp.lt.s32.totalorder %s13, 3
    %p201 = pnand %p199, %p200
    %p202 = pneg %p201
    // Predicated region
    $region9: #{critic_forward.1} parent=5 // pred_check
      _
    $region10: #{critic_forward.1} parent=5 // pred_check_branch
      %204 = sbr.rel (%p201) target = $region12
    $region11: #{critic_forward.1} parent=5 // pred_region
      %s205 = ssub.s32 %s13, 1
      // Predicated region
      $region13: #{critic_forward.1} parent=11 // pred_check
        %p206 = pneg %p60
      $region14: #{critic_forward.1} parent=11 // pred_check_branch
        %208 = sbr.rel (%p206) target = $region16
      $region15: #{critic_forward.1} parent=11 // pred_region
        _
      $region16: #{critic_forward.1} parent=11 // pred_fallthru
        _
      // Predicated region
      $region17: #{critic_forward.1} parent=11 // pred_check
        %p209 = pneg %p81
      $region18: #{critic_forward.1} parent=11 // pred_check_branch
        %211 = sbr.rel (%p209) target = $region20
      $region19: #{critic_forward.1} parent=11 // pred_region
        _
      $region20: #{critic_forward.1} parent=11 // pred_fallthru
        _
      // Predicated region
      $region21: #{critic_forward.1} parent=11 // pred_check
        %p212 = pneg %p102
      $region22: #{critic_forward.1} parent=11 // pred_check_branch
        %214 = sbr.rel (%p212) target = $region24
      $region23: #{critic_forward.1} parent=11 // pred_region
        _
      $region24: #{critic_forward.1} parent=11 // pred_fallthru
        _
      // Predicated region
      $region25: #{critic_forward.1} parent=11 // pred_check
        %p215 = pneg %p123
      $region26: #{critic_forward.1} parent=11 // pred_check_branch
        %217 = sbr.rel (%p215) target = $region28
      $region27: #{critic_forward.1} parent=11 // pred_region
        _
      $region28: #{critic_forward.1} parent=11 // pred_fallthru
        _
      // Predicated region
      $region29: #{critic_forward.1} parent=11 // pred_check
        %p218 = pneg %p144
      $region30: #{critic_forward.1} parent=11 // pred_check_branch
        %220 = sbr.rel (%p218) target = $region32
      $region31: #{critic_forward.1} parent=11 // pred_region
        _
      $region32: #{critic_forward.1} parent=11 // pred_fallthru
        _
      // Predicated region
      $region33: #{critic_forward.1} parent=11 // pred_check
        %p221 = pneg %p165
      $region34: #{critic_forward.1} parent=11 // pred_check_branch
        %223 = sbr.rel (%p221) target = $region36
      $region35: #{critic_forward.1} parent=11 // pred_region
        _
      $region36: #{critic_forward.1} parent=11 // pred_fallthru
        _
    $region12: #{critic_forward.1} parent=5 // pred_fallthru
      _
    %p224 = scmp.lt.s32.totalorder %s13, 2
    // Predicated region
    $region37: #{critic_forward.1} parent=5 // pred_check
      %p225 = pneg %p224
    $region38: #{critic_forward.1} parent=5 // pred_check_branch
      %227 = sbr.rel (%p225) target = $region40
    $region39: #{critic_forward.1} parent=5 // pred_region
      // Predicated region
      $region41: #{critic_forward.1} parent=39 // pred_check
        %p228 = pneg %p33
      $region42: #{critic_forward.1} parent=39 // pred_check_branch
        %230 = sbr.rel (%p228) target = $region44
      $region43: #{critic_forward.1} parent=39 // pred_region
        %s231 = smul.u32 32, %s13
        %p232 = scmp.lt.s32.totalorder %s231, 63
        %s233 = scalar_select %p232, %s231, 63
        %s234 = smul.addr %s233, 4
        %s235 = scalar_lea.vmem %s0, %s234
        %s236 = smul.u32 32, %s13
      $region44: #{critic_forward.1} parent=39 // pred_fallthru
        _
    $region40: #{critic_forward.1} parent=5 // pred_fallthru
      _
    %p237 = scmp.le.s32.totalorder 1, %s13
    %p238 = scmp.lt.s32.totalorder %s13, 3
    %p239 = pnand %p237, %p238
    %p240 = pneg %p239
    // Predicated region
    $region45: #{critic_forward.1} parent=5 // pred_check
      _
    $region46: #{critic_forward.1} parent=5 // pred_check_branch
      %242 = sbr.rel (%p239) target = $region48
    $region47: #{critic_forward.1} parent=5 // pred_region
      %s243 = ssub.s32 %s13, 1
      %s244 = smul.u32 32, %s18
      %p245 = scmp.lt.s32.totalorder %s244, 63
      %s246 = scalar_select %p245, %s244, 63
      %s247 = smul.addr %s246, 4
      %s248 = scalar_lea.vmem %s0, %s247
      %p249 = pneg %p39
      %p250 = pneg %p36
      %p251 = pneg %p60
      %p252 = pneg %p57
      %p253 = pneg %p81
      %p254 = pneg %p78
      %p255 = pneg %p102
      %p256 = pneg %p99
      %p257 = pneg %p123
      %p258 = pneg %p120
      %p259 = pneg %p144
      %p260 = pneg %p141
      %p261 = pneg %p165
      %p262 = pneg %p162
      %p263 = pneg %p191
      %p264 = pneg %p188
      %s265 = smul.u32 32, %s18
      %p266 = scmp.lt.s32.totalorder %s265, 63
      %s267 = scalar_select %p266, %s265, 63
      %s268 = smul.addr %s267, 8
      %s269 = scalar_lea.vmem %s7, %s268
      %s270 = smul.u32 32, %s18
      %p271 = scmp.lt.s32.totalorder %s270, 63
      %s272 = scalar_select %p271, %s270, 63
      %s273 = smul.addr %s272, 4
      %s274 = scalar_lea.vmem %s0, %s273
      %s275 = smul.u32 32, %s18
      %s276 = smul.u32 32, %s18
      %p277 = scmp.lt.s32.totalorder %s276, 63
      %s278 = scalar_select %p277, %s276, 63
      %s279 = smul.addr %s278, 8
      %s280 = scalar_lea.vmem %s7, %s279
      %s281 = smul.u32 32, %s18
      %v282 = vld [vmem:[%s274] sm:$0xf]
      %v283 = vld [vmem:[%s274 + $0x4] sm:$0xf]
      %v284 = vld [vmem:[%s274 + $0x8] sm:$0xf]
      %v285 = vld [vmem:[%s274 + $0xc] sm:$0xf]
      %v286 = vld [vmem:[%s274 + $0x10] sm:$0xf]
      %v287 = vld [vmem:[%s274 + $0x14] sm:$0xf]
      %v288 = vld [vmem:[%s274 + $0x18] sm:$0xf]
      %v289 = vld [vmem:[%s274 + $0x1c] sm:$0xf]
      %v290 = vld [vmem:[%s274 + $0x20] sm:$0xf]
      %v291 = vld [vmem:[%s274 + $0x24] sm:$0xf]
      %v292 = vld [vmem:[%s274 + $0x28] sm:$0xf]
      %v293 = vld [vmem:[%s274 + $0x2c] sm:$0xf]
      %v294 = vld [vmem:[%s274 + $0x30] sm:$0xf]
      %v295 = vld [vmem:[%s274 + $0x34] sm:$0xf]
      %v296 = vld [vmem:[%s274 + $0x38] sm:$0xf]
      %v297 = vld [vmem:[%s274 + $0x3c] sm:$0xf]
      %v298 = vld [vmem:[%s274 + $0x40] sm:$0xf]
      %v299 = vld [vmem:[%s274 + $0x44] sm:$0xf]
      %v300 = vld [vmem:[%s274 + $0x48] sm:$0xf]
      %v301 = vld [vmem:[%s274 + $0x4c] sm:$0xf]
      %v302 = vld [vmem:[%s274 + $0x50] sm:$0xf]
      %v303 = vld [vmem:[%s274 + $0x54] sm:$0xf]
      %v304 = vld [vmem:[%s274 + $0x58] sm:$0xf]
      %v305 = vld [vmem:[%s274 + $0x5c] sm:$0xf]
      %v306 = vld [vmem:[%s274 + $0x60] sm:$0xf]
      %v307 = vld [vmem:[%s274 + $0x64] sm:$0xf]
      %v308 = vld [vmem:[%s274 + $0x68] sm:$0xf]
      %v309 = vld [vmem:[%s274 + $0x6c] sm:$0xf]
      %v310 = vld [vmem:[%s274 + $0x70] sm:$0xf]
      %v311 = vld [vmem:[%s274 + $0x74] sm:$0xf]
      %v312 = vld [vmem:[%s274 + $0x78] sm:$0xf]
      %v313 = vld [vmem:[%s274 + $0x7c] sm:$0xf]
      %v314 = vld [vmem:[%s1] sm:$0xf]
      %v315 = vld [vmem:[%s1 + $0x4] sm:$0xf]
      %v316 = vld [vmem:[%s1 + $0x8] sm:$0xf]
      %v317 = vld [vmem:[%s1 + $0xc] sm:$0xf]
      %v318 = vld [vmem:[%s1 + $0x10] sm:$0xf]
      %v319 = vld [vmem:[%s1 + $0x14] sm:$0xf]
      %v320 = vld [vmem:[%s1 + $0x18] sm:$0xf]
      %v321 = vld [vmem:[%s1 + $0x1c] sm:$0xf]
      %v322 = vld [vmem:[%s1 + $0x20] sm:$0xf]
      %v323 = vld [vmem:[%s1 + $0x24] sm:$0xf]
      %v324 = vld [vmem:[%s1 + $0x28] sm:$0xf]
      %v325 = vld [vmem:[%s1 + $0x2c] sm:$0xf]
      %v326 = vld [vmem:[%s1 + $0x30] sm:$0xf]
      %v327 = vld [vmem:[%s1 + $0x34] sm:$0xf]
      %v328 = vld [vmem:[%s1 + $0x38] sm:$0xf]
      %v329 = vld [vmem:[%s1 + $0x3c] sm:$0xf]
      %v330 = vld [vmem:[%s2] sm:$0x1]
      %v332 = vperm.slane %v330, 0
      %v366 = vunpack.c.l.b16 %v282
      %v367 = vunpack.c.l.b16 %v283
      %v368 = vunpack.c.l.b16 %v284
      %v369 = vunpack.c.l.b16 %v285
      %v370 = vunpack.c.l.b16 %v286
      %v371 = vunpack.c.l.b16 %v287
      %v372 = vunpack.c.l.b16 %v288
      %v373 = vunpack.c.l.b16 %v289
      %v374 = vunpack.c.l.b16 %v290
      %v375 = vunpack.c.l.b16 %v291
      %v376 = vunpack.c.l.b16 %v292
      %v377 = vunpack.c.l.b16 %v293
      %v378 = vunpack.c.l.b16 %v294
      %v379 = vunpack.c.l.b16 %v295
      %v380 = vunpack.c.l.b16 %v296
      %v381 = vunpack.c.l.b16 %v297
      %v382 = vunpack.c.l.b16 %v298
      %v383 = vunpack.c.l.b16 %v299
      %v384 = vunpack.c.l.b16 %v300
      %v385 = vunpack.c.l.b16 %v301
      %v386 = vunpack.c.l.b16 %v302
      %v387 = vunpack.c.l.b16 %v303
      %v388 = vunpack.c.l.b16 %v304
      %v389 = vunpack.c.l.b16 %v305
      %v390 = vunpack.c.l.b16 %v306
      %v391 = vunpack.c.l.b16 %v307
      %v392 = vunpack.c.l.b16 %v308
      %v393 = vunpack.c.l.b16 %v309
      %v394 = vunpack.c.l.b16 %v310
      %v395 = vunpack.c.l.b16 %v311
      %v396 = vunpack.c.l.b16 %v312
      %v397 = vunpack.c.l.b16 %v313
      %v398 = vpack.c.b16 %v367, %v366
      %v399 = vpack.c.b16 %v369, %v368
      %v400 = vpack.c.b16 %v371, %v370
      %v401 = vpack.c.b16 %v373, %v372
      %v402 = vpack.c.b16 %v375, %v374
      %v403 = vpack.c.b16 %v377, %v376
      %v404 = vpack.c.b16 %v379, %v378
      %v405 = vpack.c.b16 %v381, %v380
      %v406 = vpack.c.b16 %v383, %v382
      %v407 = vpack.c.b16 %v385, %v384
      %v408 = vpack.c.b16 %v387, %v386
      %v409 = vpack.c.b16 %v389, %v388
      %v410 = vpack.c.b16 %v391, %v390
      %v411 = vpack.c.b16 %v393, %v392
      %v412 = vpack.c.b16 %v395, %v394
      %v413 = vpack.c.b16 %v397, %v396
      %v446 = vunpack.c.l.b16 %v314
      %v447 = vunpack.c.l.b16 %v315
      %v448 = vunpack.c.l.b16 %v316
      %v449 = vunpack.c.l.b16 %v317
      %v450 = vunpack.c.l.b16 %v318
      %v451 = vunpack.c.l.b16 %v319
      %v452 = vunpack.c.l.b16 %v320
      %v453 = vunpack.c.l.b16 %v321
      %v454 = vunpack.c.l.b16 %v322
      %v455 = vunpack.c.l.b16 %v323
      %v456 = vunpack.c.l.b16 %v324
      %v457 = vunpack.c.l.b16 %v325
      %v458 = vunpack.c.l.b16 %v326
      %v459 = vunpack.c.l.b16 %v327
      %v460 = vunpack.c.l.b16 %v328
      %v461 = vunpack.c.l.b16 %v329
      %v462 = vpack.c.b16 %v447, %v446
      %v463 = vpack.c.b16 %v449, %v448
      %v464 = vpack.c.b16 %v451, %v450
      %v465 = vpack.c.b16 %v453, %v452
      %v466 = vpack.c.b16 %v455, %v454
      %v467 = vpack.c.b16 %v457, %v456
      %v468 = vpack.c.b16 %v459, %v458
      %v469 = vpack.c.b16 %v461, %v460
      %478 = vmatpush.bf16.msra.mxu0 %v469
      %479 = vmatpush.bf16.msra.mxu0 %v468
      %480 = vmatpush.bf16.msra.mxu0 %v467
      %481 = vmatpush.bf16.msra.mxu0 %v466
      %482 = vmatpush.bf16.msra.mxu0 %v465
      %483 = vmatpush.bf16.msra.mxu0 %v464
      %484 = vmatpush.bf16.msra.mxu0 %v463
      %485 = vmatpush.bf16.msra.mxu0 %v462
      %486 = vmatmul.bf16.gmra.mxu0 %v398
      %v487 = vpop.f32.mrf.mxu0
      %v488 = vadd.f32 %v332, %v487
      %v489 = vpop.f32.mrf.mxu0
      %v490 = vadd.f32 %v332, %v489
      %491 = vmatmul.bf16.gmra.mxu0 %v399
      %v492 = vpop.f32.mrf.mxu0
      %v493 = vadd.f32 %v332, %v492
      %v494 = vpop.f32.mrf.mxu0
      %v495 = vadd.f32 %v332, %v494
      %496 = vmatmul.bf16.gmra.mxu0 %v400
      %v497 = vpop.f32.mrf.mxu0
      %v498 = vadd.f32 %v332, %v497
      %v499 = vpop.f32.mrf.mxu0
      %v500 = vadd.f32 %v332, %v499
      %501 = vmatmul.bf16.gmra.mxu0 %v401
      %v502 = vpop.f32.mrf.mxu0
      %v503 = vadd.f32 %v332, %v502
      %v504 = vpop.f32.mrf.mxu0
      %v505 = vadd.f32 %v332, %v504
      %506 = vmatmul.bf16.gmra.mxu0 %v402
      %v507 = vpop.f32.mrf.mxu0
      %v508 = vadd.f32 %v332, %v507
      %v509 = vpop.f32.mrf.mxu0
      %v510 = vadd.f32 %v332, %v509
      %511 = vmatmul.bf16.gmra.mxu0 %v403
      %v512 = vpop.f32.mrf.mxu0
      %v513 = vadd.f32 %v332, %v512
      %v514 = vpop.f32.mrf.mxu0
      %v515 = vadd.f32 %v332, %v514
      %516 = vmatmul.bf16.gmra.mxu0 %v404
      %v517 = vpop.f32.mrf.mxu0
      %v518 = vadd.f32 %v332, %v517
      %v519 = vpop.f32.mrf.mxu0
      %v520 = vadd.f32 %v332, %v519
      %521 = vmatmul.bf16.gmra.mxu0 %v405
      %v522 = vpop.f32.mrf.mxu0
      %v523 = vadd.f32 %v332, %v522
      %v524 = vpop.f32.mrf.mxu0
      %v525 = vadd.f32 %v332, %v524
      %526 = vmatmul.bf16.gmra.mxu0 %v406
      %v527 = vpop.f32.mrf.mxu0
      %v528 = vadd.f32 %v332, %v527
      %v529 = vpop.f32.mrf.mxu0
      %v530 = vadd.f32 %v332, %v529
      %531 = vmatmul.bf16.gmra.mxu0 %v407
      %v532 = vpop.f32.mrf.mxu0
      %v533 = vadd.f32 %v332, %v532
      %v534 = vpop.f32.mrf.mxu0
      %v535 = vadd.f32 %v332, %v534
      %536 = vmatmul.bf16.gmra.mxu0 %v408
      %v537 = vpop.f32.mrf.mxu0
      %v538 = vadd.f32 %v332, %v537
      %v539 = vpop.f32.mrf.mxu0
      %v540 = vadd.f32 %v332, %v539
      %541 = vmatmul.bf16.gmra.mxu0 %v409
      %v542 = vpop.f32.mrf.mxu0
      %v543 = vadd.f32 %v332, %v542
      %v544 = vpop.f32.mrf.mxu0
      %v545 = vadd.f32 %v332, %v544
      %546 = vmatmul.bf16.gmra.mxu0 %v410
      %v547 = vpop.f32.mrf.mxu0
      %v548 = vadd.f32 %v332, %v547
      %v549 = vpop.f32.mrf.mxu0
      %v550 = vadd.f32 %v332, %v549
      %551 = vmatmul.bf16.gmra.mxu0 %v411
      %v552 = vpop.f32.mrf.mxu0
      %v553 = vadd.f32 %v332, %v552
      %v554 = vpop.f32.mrf.mxu0
      %v555 = vadd.f32 %v332, %v554
      %556 = vmatmul.bf16.gmra.mxu0 %v412
      %v557 = vpop.f32.mrf.mxu0
      %v558 = vadd.f32 %v332, %v557
      %v559 = vpop.f32.mrf.mxu0
      %v560 = vadd.f32 %v332, %v559
      %561 = vmatmul.bf16.gmra.mxu0 %v413
      %v562 = vpop.f32.mrf.mxu0
      %v563 = vadd.f32 %v332, %v562
      %v564 = vpop.f32.mrf.mxu0
      %v565 = vadd.f32 %v332, %v564
      %566 = vdwg.mxu0
      %v567 = vmax.f32 %v488, 0.0
      %v568 = vmax.f32 %v490, 0.0
      %v569 = vmax.f32 %v493, 0.0
      %v570 = vmax.f32 %v495, 0.0
      %v571 = vmax.f32 %v498, 0.0
      %v572 = vmax.f32 %v500, 0.0
      %v573 = vmax.f32 %v503, 0.0
      %v574 = vmax.f32 %v505, 0.0
      %v575 = vmax.f32 %v508, 0.0
      %v576 = vmax.f32 %v510, 0.0
      %v577 = vmax.f32 %v513, 0.0
      %v578 = vmax.f32 %v515, 0.0
      %v579 = vmax.f32 %v518, 0.0
      %v580 = vmax.f32 %v520, 0.0
      %v581 = vmax.f32 %v523, 0.0
      %v582 = vmax.f32 %v525, 0.0
      %v583 = vmax.f32 %v528, 0.0
      %v584 = vmax.f32 %v530, 0.0
      %v585 = vmax.f32 %v533, 0.0
      %v586 = vmax.f32 %v535, 0.0
      %v587 = vmax.f32 %v538, 0.0
      %v588 = vmax.f32 %v540, 0.0
      %v589 = vmax.f32 %v543, 0.0
      %v590 = vmax.f32 %v545, 0.0
      %v591 = vmax.f32 %v548, 0.0
      %v592 = vmax.f32 %v550, 0.0
      %v593 = vmax.f32 %v553, 0.0
      %v594 = vmax.f32 %v555, 0.0
      %v595 = vmax.f32 %v558, 0.0
      %v596 = vmax.f32 %v560, 0.0
      %v597 = vmax.f32 %v563, 0.0
      %v598 = vmax.f32 %v565, 0.0
      %v599 = vpack.c.bf16 %v568, %v567
      %v600 = vpack.c.bf16 %v570, %v569
      %v601 = vpack.c.bf16 %v572, %v571
      %v602 = vpack.c.bf16 %v574, %v573
      %v603 = vpack.c.bf16 %v576, %v575
      %v604 = vpack.c.bf16 %v578, %v577
      %v605 = vpack.c.bf16 %v580, %v579
      %v606 = vpack.c.bf16 %v582, %v581
      %v607 = vpack.c.bf16 %v584, %v583
      %v608 = vpack.c.bf16 %v586, %v585
      %v609 = vpack.c.bf16 %v588, %v587
      %v610 = vpack.c.bf16 %v590, %v589
      %v611 = vpack.c.bf16 %v592, %v591
      %v612 = vpack.c.bf16 %v594, %v593
      %v613 = vpack.c.bf16 %v596, %v595
      %v614 = vpack.c.bf16 %v598, %v597
      %v615 = vld [vmem:[%s3] sm:$0xf]
      %v616 = vld [vmem:[%s3 + $0x4] sm:$0xf]
      %v617 = vld [vmem:[%s3 + $0x8] sm:$0xf]
      %v618 = vld [vmem:[%s3 + $0xc] sm:$0xf]
      %v619 = vld [vmem:[%s3 + $0x10] sm:$0xf]
      %v620 = vld [vmem:[%s3 + $0x14] sm:$0xf]
      %v621 = vld [vmem:[%s3 + $0x18] sm:$0xf]
      %v622 = vld [vmem:[%s3 + $0x1c] sm:$0xf]
      %v623 = vld [vmem:[%s3 + $0x20] sm:$0xf]
      %v624 = vld [vmem:[%s3 + $0x24] sm:$0xf]
      %v625 = vld [vmem:[%s3 + $0x28] sm:$0xf]
      %v626 = vld [vmem:[%s3 + $0x2c] sm:$0xf]
      %v627 = vld [vmem:[%s3 + $0x30] sm:$0xf]
      %v628 = vld [vmem:[%s3 + $0x34] sm:$0xf]
      %v629 = vld [vmem:[%s3 + $0x38] sm:$0xf]
      %v630 = vld [vmem:[%s3 + $0x3c] sm:$0xf]
      %v631 = vld [vmem:[%s4] sm:$0x1]
      %v633 = vperm.slane %v631, 0
      %v651 = vunpack.c.l.b16 %v615
      %v652 = vunpack.c.l.b16 %v616
      %v653 = vunpack.c.l.b16 %v617
      %v654 = vunpack.c.l.b16 %v618
      %v655 = vunpack.c.l.b16 %v619
      %v656 = vunpack.c.l.b16 %v620
      %v657 = vunpack.c.l.b16 %v621
      %v658 = vunpack.c.l.b16 %v622
      %v659 = vunpack.c.l.b16 %v623
      %v660 = vunpack.c.l.b16 %v624
      %v661 = vunpack.c.l.b16 %v625
      %v662 = vunpack.c.l.b16 %v626
      %v663 = vunpack.c.l.b16 %v627
      %v664 = vunpack.c.l.b16 %v628
      %v665 = vunpack.c.l.b16 %v629
      %v666 = vunpack.c.l.b16 %v630
      %v667 = vpack.c.b16 %v652, %v651
      %v668 = vpack.c.b16 %v654, %v653
      %v669 = vpack.c.b16 %v656, %v655
      %v670 = vpack.c.b16 %v658, %v657
      %v671 = vpack.c.b16 %v660, %v659
      %v672 = vpack.c.b16 %v662, %v661
      %v673 = vpack.c.b16 %v664, %v663
      %v674 = vpack.c.b16 %v666, %v665
      %683 = vmatpush.bf16.msra.mxu0 %v674
      %684 = vmatpush.bf16.msra.mxu0 %v673
      %685 = vmatpush.bf16.msra.mxu0 %v672
      %686 = vmatpush.bf16.msra.mxu0 %v671
      %687 = vmatpush.bf16.msra.mxu0 %v670
      %688 = vmatpush.bf16.msra.mxu0 %v669
      %689 = vmatpush.bf16.msra.mxu0 %v668
      %690 = vmatpush.bf16.msra.mxu0 %v667
      %691 = vmatmul.bf16.gmra.mxu0 %v599
      %v692 = vpop.f32.mrf.mxu0
      %v693 = vadd.f32 %v633, %v692
      %v694 = vpop.f32.mrf.mxu0
      %v695 = vadd.f32 %v633, %v694
      %696 = vmatmul.bf16.gmra.mxu0 %v600
      %v697 = vpop.f32.mrf.mxu0
      %v698 = vadd.f32 %v633, %v697
      %v699 = vpop.f32.mrf.mxu0
      %v700 = vadd.f32 %v633, %v699
      %701 = vmatmul.bf16.gmra.mxu0 %v601
      %v702 = vpop.f32.mrf.mxu0
      %v703 = vadd.f32 %v633, %v702
      %v704 = vpop.f32.mrf.mxu0
      %v705 = vadd.f32 %v633, %v704
      %706 = vmatmul.bf16.gmra.mxu0 %v602
      %v707 = vpop.f32.mrf.mxu0
      %v708 = vadd.f32 %v633, %v707
      %v709 = vpop.f32.mrf.mxu0
      %v710 = vadd.f32 %v633, %v709
      %711 = vmatmul.bf16.gmra.mxu0 %v603
      %v712 = vpop.f32.mrf.mxu0
      %v713 = vadd.f32 %v633, %v712
      %v714 = vpop.f32.mrf.mxu0
      %v715 = vadd.f32 %v633, %v714
      %716 = vmatmul.bf16.gmra.mxu0 %v604
      %v717 = vpop.f32.mrf.mxu0
      %v718 = vadd.f32 %v633, %v717
      %v719 = vpop.f32.mrf.mxu0
      %v720 = vadd.f32 %v633, %v719
      %721 = vmatmul.bf16.gmra.mxu0 %v605
      %v722 = vpop.f32.mrf.mxu0
      %v723 = vadd.f32 %v633, %v722
      %v724 = vpop.f32.mrf.mxu0
      %v725 = vadd.f32 %v633, %v724
      %726 = vmatmul.bf16.gmra.mxu0 %v606
      %v727 = vpop.f32.mrf.mxu0
      %v728 = vadd.f32 %v633, %v727
      %v729 = vpop.f32.mrf.mxu0
      %v730 = vadd.f32 %v633, %v729
      %731 = vmatmul.bf16.gmra.mxu0 %v607
      %v732 = vpop.f32.mrf.mxu0
      %v733 = vadd.f32 %v633, %v732
      %v734 = vpop.f32.mrf.mxu0
      %v735 = vadd.f32 %v633, %v734
      %736 = vmatmul.bf16.gmra.mxu0 %v608
      %v737 = vpop.f32.mrf.mxu0
      %v738 = vadd.f32 %v633, %v737
      %v739 = vpop.f32.mrf.mxu0
      %v740 = vadd.f32 %v633, %v739
      %741 = vmatmul.bf16.gmra.mxu0 %v609
      %v742 = vpop.f32.mrf.mxu0
      %v743 = vadd.f32 %v633, %v742
      %v744 = vpop.f32.mrf.mxu0
      %v745 = vadd.f32 %v633, %v744
      %746 = vmatmul.bf16.gmra.mxu0 %v610
      %v747 = vpop.f32.mrf.mxu0
      %v748 = vadd.f32 %v633, %v747
      %v749 = vpop.f32.mrf.mxu0
      %v750 = vadd.f32 %v633, %v749
      %751 = vmatmul.bf16.gmra.mxu0 %v611
      %v752 = vpop.f32.mrf.mxu0
      %v753 = vadd.f32 %v633, %v752
      %v754 = vpop.f32.mrf.mxu0
      %v755 = vadd.f32 %v633, %v754
      %756 = vmatmul.bf16.gmra.mxu0 %v612
      %v757 = vpop.f32.mrf.mxu0
      %v758 = vadd.f32 %v633, %v757
      %v759 = vpop.f32.mrf.mxu0
      %v760 = vadd.f32 %v633, %v759
      %761 = vmatmul.bf16.gmra.mxu0 %v613
      %v762 = vpop.f32.mrf.mxu0
      %v763 = vadd.f32 %v633, %v762
      %v764 = vpop.f32.mrf.mxu0
      %v765 = vadd.f32 %v633, %v764
      %766 = vmatmul.bf16.gmra.mxu0 %v614
      %v767 = vpop.f32.mrf.mxu0
      %v768 = vadd.f32 %v633, %v767
      %v769 = vpop.f32.mrf.mxu0
      %v770 = vadd.f32 %v633, %v769
      %771 = vdwg.mxu0
      %v772 = vmax.f32 %v693, 0.0
      %v773 = vmax.f32 %v695, 0.0
      %v774 = vmax.f32 %v698, 0.0
      %v775 = vmax.f32 %v700, 0.0
      %v776 = vmax.f32 %v703, 0.0
      %v777 = vmax.f32 %v705, 0.0
      %v778 = vmax.f32 %v708, 0.0
      %v779 = vmax.f32 %v710, 0.0
      %v780 = vmax.f32 %v713, 0.0
      %v781 = vmax.f32 %v715, 0.0
      %v782 = vmax.f32 %v718, 0.0
      %v783 = vmax.f32 %v720, 0.0
      %v784 = vmax.f32 %v723, 0.0
      %v785 = vmax.f32 %v725, 0.0
      %v786 = vmax.f32 %v728, 0.0
      %v787 = vmax.f32 %v730, 0.0
      %v788 = vmax.f32 %v733, 0.0
      %v789 = vmax.f32 %v735, 0.0
      %v790 = vmax.f32 %v738, 0.0
      %v791 = vmax.f32 %v740, 0.0
      %v792 = vmax.f32 %v743, 0.0
      %v793 = vmax.f32 %v745, 0.0
      %v794 = vmax.f32 %v748, 0.0
      %v795 = vmax.f32 %v750, 0.0
      %v796 = vmax.f32 %v753, 0.0
      %v797 = vmax.f32 %v755, 0.0
      %v798 = vmax.f32 %v758, 0.0
      %v799 = vmax.f32 %v760, 0.0
      %v800 = vmax.f32 %v763, 0.0
      %v801 = vmax.f32 %v765, 0.0
      %v802 = vmax.f32 %v768, 0.0
      %v803 = vmax.f32 %v770, 0.0
      %v804 = vpack.c.bf16 %v773, %v772
      %v805 = vpack.c.bf16 %v775, %v774
      %v806 = vpack.c.bf16 %v777, %v776
      %v807 = vpack.c.bf16 %v779, %v778
      %v808 = vpack.c.bf16 %v781, %v780
      %v809 = vpack.c.bf16 %v783, %v782
      %v810 = vpack.c.bf16 %v785, %v784
      %v811 = vpack.c.bf16 %v787, %v786
      %v812 = vpack.c.bf16 %v789, %v788
      %v813 = vpack.c.bf16 %v791, %v790
      %v814 = vpack.c.bf16 %v793, %v792
      %v815 = vpack.c.bf16 %v795, %v794
      %v816 = vpack.c.bf16 %v797, %v796
      %v817 = vpack.c.bf16 %v799, %v798
      %v818 = vpack.c.bf16 %v801, %v800
      %v819 = vpack.c.bf16 %v803, %v802
      %v820 = vld [vmem:[%s5] sm:$0xf]
      %v821 = vld [vmem:[%s5 + $0x4] sm:$0xf]
      %v822 = vld [vmem:[%s5 + $0x8] sm:$0xf]
      %v823 = vld [vmem:[%s5 + $0xc] sm:$0xf]
      %v824 = vld [vmem:[%s5 + $0x10] sm:$0xf]
      %v825 = vld [vmem:[%s5 + $0x14] sm:$0xf]
      %v826 = vld [vmem:[%s5 + $0x18] sm:$0xf]
      %v827 = vld [vmem:[%s5 + $0x1c] sm:$0xf]
      %v828 = vld [vmem:[%s5 + $0x20] sm:$0xf]
      %v829 = vld [vmem:[%s5 + $0x24] sm:$0xf]
      %v830 = vld [vmem:[%s5 + $0x28] sm:$0xf]
      %v831 = vld [vmem:[%s5 + $0x2c] sm:$0xf]
      %v832 = vld [vmem:[%s5 + $0x30] sm:$0xf]
      %v833 = vld [vmem:[%s5 + $0x34] sm:$0xf]
      %v834 = vld [vmem:[%s5 + $0x38] sm:$0xf]
      %v835 = vld [vmem:[%s5 + $0x3c] sm:$0xf]
      %v836 = vld [vmem:[%s6] sm:$0x1]
      %v838 = vperm.slane %v836, 0
      %v856 = vunpack.c.l.b16 %v820
      %v857 = vunpack.c.l.b16 %v821
      %v858 = vunpack.c.l.b16 %v822
      %v859 = vunpack.c.l.b16 %v823
      %v860 = vunpack.c.l.b16 %v824
      %v861 = vunpack.c.l.b16 %v825
      %v862 = vunpack.c.l.b16 %v826
      %v863 = vunpack.c.l.b16 %v827
      %v864 = vunpack.c.l.b16 %v828
      %v865 = vunpack.c.l.b16 %v829
      %v866 = vunpack.c.l.b16 %v830
      %v867 = vunpack.c.l.b16 %v831
      %v868 = vunpack.c.l.b16 %v832
      %v869 = vunpack.c.l.b16 %v833
      %v870 = vunpack.c.l.b16 %v834
      %v871 = vunpack.c.l.b16 %v835
      %v872 = vpack.c.b16 %v857, %v856
      %v873 = vpack.c.b16 %v859, %v858
      %v874 = vpack.c.b16 %v861, %v860
      %v875 = vpack.c.b16 %v863, %v862
      %v876 = vpack.c.b16 %v865, %v864
      %v877 = vpack.c.b16 %v867, %v866
      %v878 = vpack.c.b16 %v869, %v868
      %v879 = vpack.c.b16 %v871, %v870
      %888 = vmatpush.bf16.msra.mxu0 %v879
      %889 = vmatpush.bf16.msra.mxu0 %v878
      %890 = vmatpush.bf16.msra.mxu0 %v877
      %891 = vmatpush.bf16.msra.mxu0 %v876
      %892 = vmatpush.bf16.msra.mxu0 %v875
      %893 = vmatpush.bf16.msra.mxu0 %v874
      %894 = vmatpush.bf16.msra.mxu0 %v873
      %895 = vmatpush.bf16.msra.mxu0 %v872
      %896 = vmatmul.bf16.gmra.mxu0 %v804
      %v897 = vpop.f32.mrf.mxu0
      %v898 = vadd.f32 %v838, %v897
      %v899 = vpop.f32.mrf.mxu0
      %v900 = vadd.f32 %v838, %v899
      %901 = vmatmul.bf16.gmra.mxu0 %v805
      %v902 = vpop.f32.mrf.mxu0
      %v903 = vadd.f32 %v838, %v902
      %v904 = vpop.f32.mrf.mxu0
      %v905 = vadd.f32 %v838, %v904
      %906 = vmatmul.bf16.gmra.mxu0 %v806
      %v907 = vpop.f32.mrf.mxu0
      %v908 = vadd.f32 %v838, %v907
      %v909 = vpop.f32.mrf.mxu0
      %v910 = vadd.f32 %v838, %v909
      %911 = vmatmul.bf16.gmra.mxu0 %v807
      %v912 = vpop.f32.mrf.mxu0
      %v913 = vadd.f32 %v838, %v912
      %v914 = vpop.f32.mrf.mxu0
      %v915 = vadd.f32 %v838, %v914
      %916 = vmatmul.bf16.gmra.mxu0 %v808
      %v917 = vpop.f32.mrf.mxu0
      %v918 = vadd.f32 %v838, %v917
      %v919 = vpop.f32.mrf.mxu0
      %v920 = vadd.f32 %v838, %v919
      %921 = vmatmul.bf16.gmra.mxu0 %v809
      %v922 = vpop.f32.mrf.mxu0
      %v923 = vadd.f32 %v838, %v922
      %v924 = vpop.f32.mrf.mxu0
      %v925 = vadd.f32 %v838, %v924
      %926 = vmatmul.bf16.gmra.mxu0 %v810
      %v927 = vpop.f32.mrf.mxu0
      %v928 = vadd.f32 %v838, %v927
      %v929 = vpop.f32.mrf.mxu0
      %v930 = vadd.f32 %v838, %v929
      %931 = vmatmul.bf16.gmra.mxu0 %v811
      %v932 = vpop.f32.mrf.mxu0
      %v933 = vadd.f32 %v838, %v932
      %v934 = vpop.f32.mrf.mxu0
      %v935 = vadd.f32 %v838, %v934
      %936 = vmatmul.bf16.gmra.mxu0 %v812
      %v937 = vpop.f32.mrf.mxu0
      %v938 = vadd.f32 %v838, %v937
      %v939 = vpop.f32.mrf.mxu0
      %v940 = vadd.f32 %v838, %v939
      %941 = vmatmul.bf16.gmra.mxu0 %v813
      %v942 = vpop.f32.mrf.mxu0
      %v943 = vadd.f32 %v838, %v942
      %v944 = vpop.f32.mrf.mxu0
      %v945 = vadd.f32 %v838, %v944
      %946 = vmatmul.bf16.gmra.mxu0 %v814
      %v947 = vpop.f32.mrf.mxu0
      %v948 = vadd.f32 %v838, %v947
      %v949 = vpop.f32.mrf.mxu0
      %v950 = vadd.f32 %v838, %v949
      %951 = vmatmul.bf16.gmra.mxu0 %v815
      %v952 = vpop.f32.mrf.mxu0
      %v953 = vadd.f32 %v838, %v952
      %v954 = vpop.f32.mrf.mxu0
      %v955 = vadd.f32 %v838, %v954
      %956 = vmatmul.bf16.gmra.mxu0 %v816
      %v957 = vpop.f32.mrf.mxu0
      %v958 = vadd.f32 %v838, %v957
      %v959 = vpop.f32.mrf.mxu0
      %v960 = vadd.f32 %v838, %v959
      %961 = vmatmul.bf16.gmra.mxu0 %v817
      %v962 = vpop.f32.mrf.mxu0
      %v963 = vadd.f32 %v838, %v962
      %v964 = vpop.f32.mrf.mxu0
      %v965 = vadd.f32 %v838, %v964
      %966 = vmatmul.bf16.gmra.mxu0 %v818
      %v967 = vpop.f32.mrf.mxu0
      %v968 = vadd.f32 %v838, %v967
      %v969 = vpop.f32.mrf.mxu0
      %v970 = vadd.f32 %v838, %v969
      %971 = vmatmul.bf16.gmra.mxu0 %v819
      %v972 = vpop.f32.mrf.mxu0
      %v973 = vadd.f32 %v838, %v972
      %v974 = vpop.f32.mrf.mxu0
      %v975 = vadd.f32 %v838, %v974
      %976 = vdwg.mxu0
      %977 = vst [vmem:[%s280] sm:$0xff] %v898
      %978 = vst [vmem:[%s280 + $0x8] sm:$0xff] %v900
      %979 = vst [vmem:[%s280 + $0x10] sm:$0xff] %v903
      %980 = vst [vmem:[%s280 + $0x18] sm:$0xff] %v905
      %981 = vst [vmem:[%s280 + $0x20] sm:$0xff] %v908
      %982 = vst [vmem:[%s280 + $0x28] sm:$0xff] %v910
      %983 = vst [vmem:[%s280 + $0x30] sm:$0xff] %v913
      %984 = vst [vmem:[%s280 + $0x38] sm:$0xff] %v915
      %985 = vst [vmem:[%s280 + $0x40] sm:$0xff] %v918
      %986 = vst [vmem:[%s280 + $0x48] sm:$0xff] %v920
      %987 = vst [vmem:[%s280 + $0x50] sm:$0xff] %v923
      %988 = vst [vmem:[%s280 + $0x58] sm:$0xff] %v925
      %989 = vst [vmem:[%s280 + $0x60] sm:$0xff] %v928
      %990 = vst [vmem:[%s280 + $0x68] sm:$0xff] %v930
      %991 = vst [vmem:[%s280 + $0x70] sm:$0xff] %v933
      %992 = vst [vmem:[%s280 + $0x78] sm:$0xff] %v935
      %993 = vst [vmem:[%s280 + $0x80] sm:$0xff] %v938
      %994 = vst [vmem:[%s280 + $0x88] sm:$0xff] %v940
      %995 = vst [vmem:[%s280 + $0x90] sm:$0xff] %v943
      %996 = vst [vmem:[%s280 + $0x98] sm:$0xff] %v945
      %997 = vst [vmem:[%s280 + $0xa0] sm:$0xff] %v948
      %998 = vst [vmem:[%s280 + $0xa8] sm:$0xff] %v950
      %999 = vst [vmem:[%s280 + $0xb0] sm:$0xff] %v953
      %1000 = vst [vmem:[%s280 + $0xb8] sm:$0xff] %v955
      %1001 = vst [vmem:[%s280 + $0xc0] sm:$0xff] %v958
      %1002 = vst [vmem:[%s280 + $0xc8] sm:$0xff] %v960
      %1003 = vst [vmem:[%s280 + $0xd0] sm:$0xff] %v963
      %1004 = vst [vmem:[%s280 + $0xd8] sm:$0xff] %v965
      %1005 = vst [vmem:[%s280 + $0xe0] sm:$0xff] %v968
      %1006 = vst [vmem:[%s280 + $0xe8] sm:$0xff] %v970
      %1007 = vst [vmem:[%s280 + $0xf0] sm:$0xff] %v973
      %1008 = vst [vmem:[%s280 + $0xf8] sm:$0xff] %v975
      %s1009 = smul.u32 32, %s18
      %p1010 = scmp.lt.s32.totalorder %s1009, 63
      %s1011 = scalar_select %p1010, %s1009, 63
      %s1012 = smul.addr %s1011, 8
      %s1013 = scalar_lea.vmem %s7, %s1012
      // Predicated region
      $region49: #{critic_forward.1} parent=47 // pred_check
        %p1014 = pneg %p188
      $region50: #{critic_forward.1} parent=47 // pred_check_branch
        %1016 = sbr.rel (%p1014) target = $region52
      $region51: #{critic_forward.1} parent=47 // pred_region
        %s1017 = smul.u32 32, %s18
      $region52: #{critic_forward.1} parent=47 // pred_fallthru
        _
    $region48: #{critic_forward.1} parent=5 // pred_fallthru
      _
    %p1018 = scmp.le.s32.totalorder 2, %s13
    // Predicated region
    $region53: #{critic_forward.1} parent=5 // pred_check
      %p1019 = pneg %p1018
    $region54: #{critic_forward.1} parent=5 // pred_check_branch
      %1021 = sbr.rel (%p1019) target = $region56
    $region55: #{critic_forward.1} parent=5 // pred_region
      %s1022 = ssub.s32 %s13, 2
      // Predicated region
      $region57: #{critic_forward.1} parent=55 // pred_check
        %p1023 = pneg %p194
      $region58: #{critic_forward.1} parent=55 // pred_check_branch
        %1025 = sbr.rel (%p1023) target = $region60
      $region59: #{critic_forward.1} parent=55 // pred_region
        %s1026 = smul.u32 32, %s19
        %p1027 = scmp.lt.s32.totalorder %s1026, 63
        %s1028 = scalar_select %p1027, %s1026, 63
        %s1029 = smul.addr %s1028, 8
        %s1030 = scalar_lea.vmem %s7, %s1029
      $region60: #{critic_forward.1} parent=55 // pred_fallthru
        _
    $region56: #{critic_forward.1} parent=5 // pred_fallthru
      _
  $region6: #{critic_forward.1} parent=0 // loop_footer
    %s17 = sadd.s32 1, %s13
  $region7: #{critic_forward.1} parent=0 // loop_footer_branch
    %12 = sbr.rel target = $region3
  $region8: #{critic_forward.1} parent=0 // loop_exit
    _

</llo_original>
